<compile_context>
chip_gen: v5e
topology: v5e:2x2
jax: 0.10.0
libtpu: 0.0.40
codegen_flags: <defaults>
</compile_context>

<pallas_src>
import jax
import jax.numpy as jnp
from jax.experimental import pallas as pl
from jax.experimental.pallas import tpu as pltpu

LANES = 128


def _round_up(x, m):
    return (x + m - 1) // m * m


def _svm_linear_kernel(x_ref, w_ref, b_ref, o_ref):
    # x_ref: (Bt, D)  VMEM batch tile (streamed; may be bf16 or f32)
    # w_ref: (1,  D)  f32 VMEM weight row (PyTorch layout, no transpose)
    # b_ref: (1,)     f32 SMEM scalar bias
    # o_ref: (1, Bt)  f32 VMEM lane-major output row (dense store, tiny writeback)
    xv = x_ref[...].astype(jnp.float32)              # upcast (no-op for f32 input)
    prod = xv * w_ref[...]                           # VPU elementwise, row broadcast
    acc = jnp.sum(prod, axis=-1, keepdims=True)      # XLU lane reduce -> (Bt, 1)
    row = jnp.transpose(acc, (1, 0))                 # small XLU relayout -> (1, Bt)
    o_ref[...] = (row + b_ref[0]).astype(o_ref.dtype)


def _choose_batch_tile(B, b_tile):
    """Pick the batch tile: big enough to amortize per-step overhead, 128-aligned
    when the batch is tiled, and >=2 grid steps for large B (v7x megacore)."""
    if B <= 256:
        return B                                   # single step, full-dim block
    if B <= 2 * b_tile:
        return _round_up(-(-B // 2), LANES)        # exactly two steps
    return b_tile


def svm_forward(x, weight, bias, *, b_tile=1024):
    """nn.Linear(input_dim, 1) forward: out = x @ weight.T + bias.

    x: (B, D) f32/bf16, weight: (1, D), bias: (1,)  ->  (B, 1) f32 logits.
    """
    B, D = x.shape
    N, Dw = weight.shape
    assert N == 1, "kernel specialized for num_classes == 1 (as in the spec)"
    assert Dw == D and bias.shape == (N,)

    Bt = _choose_batch_tile(B, b_tile)
    grid = (pl.cdiv(B, Bt),)

    weight_f32 = weight.astype(jnp.float32)
    bias_smem = bias.astype(jnp.float32)           # (1,) scalar in SMEM

    out_row = pl.pallas_call(
        _svm_linear_kernel,
        out_shape=jax.ShapeDtypeStruct((1, B), jnp.float32),
        grid=grid,
        in_specs=[
            pl.BlockSpec((Bt, D), lambda i: (i, 0)),             # x batch tile (unpadded)
            pl.BlockSpec((1, D), lambda i: (0, 0)),              # weight row (resident)
            pl.BlockSpec(memory_space=pltpu.MemorySpace.SMEM),   # bias scalar
        ],
        out_specs=pl.BlockSpec((1, Bt), lambda i: (0, i)),        # lane-major logits
        compiler_params=pltpu.CompilerParams(
            dimension_semantics=("parallel",)),
        cost_estimate=pl.CostEstimate(
            flops=2 * B * D,
            transcendentals=0,
            bytes_accessed=int(x.dtype.itemsize) * B * D + 4 * (D + 1 + B)),
    )(x, weight_f32, bias_smem)

    # (1, B) row -> (B, 1) logits (matches nn.Linear output shape); trivial reshape.
    return jnp.reshape(out_row, (B, N))


if __name__ == "__main__":
    input_dim = 28 * 28   # 784, as in the PyTorch module
    num_classes = 1
    batch = 8

    key = jax.random.PRNGKey(0)
    kx, kw, kb = jax.random.split(key, 3)

    # Deterministic init mirroring nn.Linear default: U(-1/sqrt(D), 1/sqrt(D))
    bound = 1.0 / (input_dim ** 0.5)
    weight = jax.random.uniform(kw, (num_classes, input_dim),
                                minval=-bound, maxval=bound, dtype=jnp.float32)
    bias = jax.random.uniform(kb, (num_classes,),
                              minval=-bound, maxval=bound, dtype=jnp.float32)
    x = jax.random.normal(kx, (batch, input_dim), dtype=jnp.float32)

    out = svm_forward(x, weight, bias)
    out = jax.block_until_ready(out)

    # Reference check against plain-JAX linear (same semantics as nn.Linear).
    ref = x @ weight.T + bias[None, :]
    assert out.shape == (batch, num_classes)
    assert jnp.allclose(out, ref, atol=1e-5, rtol=1e-5), "mismatch vs reference"

    print("KERNEL_OK")
</pallas_src>

<mosaic_0001>
module attributes {stable_mosaic.version = 11 : i64} {
  func.func @_svm_linear_kernel(%arg0: i32, %arg1: memref<8x784xf32, #tpu.memory_space<vmem>>, %arg2: memref<1x784xf32, #tpu.memory_space<vmem>>, %arg3: memref<1xf32, #tpu.memory_space<smem>>, %arg4: memref<1x8xf32, #tpu.memory_space<vmem>>) attributes {dimension_semantics = [#tpu.dimension_semantics<parallel>], iteration_bounds = array<i64: 1>, scalar_prefetch = 0 : i64, scratch_operands = 0 : i64, tpu.core_type = #tpu.core_type<tc>, window_params = [{transform_indices = @transform_0, window_bounds = array<i64: 8, 784>}, {pipeline_mode = #tpu.pipeline_mode<synchronous>, transform_indices = @transform_1, window_bounds = array<i64: 1, 784>}, {transform_indices = @transform_2, window_bounds = array<i64: 1>}, {transform_indices = @transform_3, window_bounds = array<i64: 1, 8>}]} {
    %c0 = arith.constant 0 : index
    %c0_0 = arith.constant 0 : index
    %0 = vector.load %arg1[%c0, %c0_0] : memref<8x784xf32, #tpu.memory_space<vmem>>, vector<8x784xf32>
    %c0_1 = arith.constant 0 : index
    %c0_2 = arith.constant 0 : index
    %1 = vector.load %arg2[%c0_1, %c0_2] : memref<1x784xf32, #tpu.memory_space<vmem>>, vector<1x784xf32>
    %2 = vector.broadcast %1 : vector<1x784xf32> to vector<8x784xf32>
    %3 = arith.mulf %0, %2 : vector<8x784xf32>
    %cst = arith.constant dense<0.000000e+00> : vector<8xf32>
    %4 = vector.multi_reduction <add>, %3, %cst [1] : vector<8x784xf32> to vector<8xf32>
    %5 = vector.shape_cast %4 : vector<8xf32> to vector<8x1xf32>
    %6 = tpu.transpose %5, [1, 0] : vector<8x1xf32> -> vector<1x8xf32>
    %c0_3 = arith.constant 0 : index
    %7 = memref.load %arg3[%c0_3] : memref<1xf32, #tpu.memory_space<smem>>
    %8 = vector.broadcast %7 : f32 to vector<1x8xf32>
    %9 = arith.addf %6, %8 : vector<1x8xf32>
    %c0_4 = arith.constant 0 : index
    %c0_5 = arith.constant 0 : index
    %10 = vector.load %arg4[%c0_4, %c0_5] : memref<1x8xf32, #tpu.memory_space<vmem>>, vector<1x8xf32>
    tpu.vector_store %arg4[%c0_4, %c0_5], %9 {strides = array<i32>} : memref<1x8xf32, #tpu.memory_space<vmem>>, vector<1x8xf32>,
    return
  }
  func.func @transform_0(%arg0: i32) -> (i32, i32) {
    %c0_i32 = arith.constant 0 : i32
    %c0_i32_0 = arith.constant 0 : i32
    return %arg0, %c0_i32 : i32, i32
  }
  func.func @transform_1(%arg0: i32) -> (i32, i32) {
    %c0_i32 = arith.constant 0 : i32
    %c0_i32_0 = arith.constant 0 : i32
    %c0_i32_1 = arith.constant 0 : i32
    return %c0_i32, %c0_i32_0 : i32, i32
  }
  func.func @transform_2(%arg0: i32) -> i32 {
    %c0_i32 = arith.constant 0 : i32
    %c0_i32_0 = arith.constant 0 : i32
    return %c0_i32 : i32
  }
  func.func @transform_3(%arg0: i32) -> (i32, i32) {
    %c0_i32 = arith.constant 0 : i32
    %c0_i32_0 = arith.constant 0 : i32
    return %c0_i32, %arg0 : i32, i32
  }
}

</mosaic_0001>

<llo_original>
// kernel: tpu_custom_call.1
$region0: #{tpu_custom_call.1}
  #allocation0 [shape = 'u32[]', space=smem, size = 0x4, offset = 0x4, fixed_abs, tag = 'smem constant byte address 0x4 - core index']
  #allocation1 [shape = 'u32[72,128]{1,0:T(1,128)}', space=vmem, size = 0x9000, scoped, tag = 'internal scratch']
  #allocation2 [shape = 'f32[1]{0:T(128)S(6)}', space=smem, size = 0x200, scoped, tag = 'scoped memory for tpu_custom_call.1']
  %s0 = inlined_call_operand.hbm [shape: f32[8,784], index: 0, kind: input, shape index: {}]
  %s1 = inlined_call_operand.hbm [shape: f32[1,784], index: 1, kind: input, shape index: {}]
  %s2 = inlined_call_operand.<no memory space> [shape: f32[1], index: 2, kind: input, shape index: {}]
  %s3 = inlined_call_operand.hbm [shape: f32[1,8], index: 3, kind: output, shape index: {}]
  %s4 = sld [smem:[#allocation0]]
  $region30: #{tpu_custom_call.1} parent=0
    _
  %s6 = ssub.s32 1, %s4
  %s7 = scalar_select 0, %s6, %s4
  %8 = sst [smem:[#allocation2]] %s2
  $region1: #{tpu_custom_call.1} parent=0
    #allocation3 [shape = 'u8[28672]{0}', space=vmem, size = 0x7000, scoped, tag = 'input window, operand 0, single buffered']
    #allocation4 [shape = 's32[1]{0}', space=sflag, size = 0x4, scoped, tag = 'scoped memory for tpu_custom_call.1']
    #allocation5 [shape = 's32[1]{0}', space=sflag, size = 0x4, scoped, tag = 'scoped memory for tpu_custom_call.1']
    #allocation6 [shape = 'u8[3584]{0}', space=vmem, size = 0x1000, scoped, tag = 'input window, operand 1, single buffered']
    #allocation7 [shape = 's32[1]{0}', space=sflag, size = 0x4, scoped, tag = 'scoped memory for tpu_custom_call.1']
    #allocation8 [shape = 'u8[512]{0}', space=vmem, size = 0x400, scoped, tag = 'output window, operand 0, single buffered']
    %9 = vsyncpa [#allocation4], 0
    %10 = vsyncpa [#allocation7], 0
    %11 = vsyncpa [#allocation5], 0
    // Predicated region
    $region2: #{tpu_custom_call.1} parent=1 // pred_check
      _
    $region3: #{tpu_custom_call.1} parent=1 // pred_check_branch
      %13 = sbr.rel (0) target = $region5
    $region4: #{tpu_custom_call.1} parent=1 // pred_region
      %15 = vsyncadd [#allocation4], 0
      %s17 = sshll.u32 %s0, 4
      %s18 = int_to_ptr.hbm [resolvable:$true] %s17
      %s19 = sshll.u32 [#allocation3], 4
      %s20 = int_to_ptr.vmem [resolvable:$true] %s19
      %22 = dma.hbm_to_vmem [thread:$0]  %s18, 896, %s20, [#allocation4]
    $region5: #{tpu_custom_call.1} parent=1 // pred_fallthru
      _
    // Predicated region
    $region6: #{tpu_custom_call.1} parent=1 // pred_check
      _
    $region7: #{tpu_custom_call.1} parent=1 // pred_check_branch
      %24 = sbr.rel (0) target = $region9
    $region8: #{tpu_custom_call.1} parent=1 // pred_region
      %26 = vsyncadd [#allocation7], 0
      %s28 = sshll.u32 %s1, 4
      %s29 = int_to_ptr.hbm [resolvable:$true] %s28
      %s30 = sshll.u32 [#allocation6], 4
      %s31 = int_to_ptr.vmem [resolvable:$true] %s30
      %33 = dma.hbm_to_vmem [thread:$0]  %s29, 112, %s31, [#allocation7]
    $region9: #{tpu_custom_call.1} parent=1 // pred_fallthru
      _
    // Predicated region
    $region10: #{tpu_custom_call.1} parent=1 // pred_check
      _
    $region11: #{tpu_custom_call.1} parent=1 // pred_check_branch
      %35 = sbr.rel (0) target = $region13
    $region12: #{tpu_custom_call.1} parent=1 // pred_region
      _
    $region13: #{tpu_custom_call.1} parent=1 // pred_fallthru
      _
    // Predicated region
    $region14: #{tpu_custom_call.1} parent=1 // pred_check
      _
    $region15: #{tpu_custom_call.1} parent=1 // pred_check_branch
      %37 = sbr.rel (0) target = $region17
    $region16: #{tpu_custom_call.1} parent=1 // pred_region
      %39 = dma.done [#allocation4], 896
    $region17: #{tpu_custom_call.1} parent=1 // pred_fallthru
      _
    // Predicated region
    $region18: #{tpu_custom_call.1} parent=1 // pred_check
      _
    $region19: #{tpu_custom_call.1} parent=1 // pred_check_branch
      %41 = sbr.rel (0) target = $region21
    $region20: #{tpu_custom_call.1} parent=1 // pred_region
      %43 = dma.done [#allocation7], 112
    $region21: #{tpu_custom_call.1} parent=1 // pred_fallthru
      _
    %v44 = vld [vmem:[#allocation3] sm:$0xff]
    %v45 = vld [vmem:[#allocation3 + $0x8] sm:$0xff]
    %v46 = vld [vmem:[#allocation3 + $0x10] sm:$0xff]
    %v47 = vld [vmem:[#allocation3 + $0x18] sm:$0xff]
    %v48 = vld [vmem:[#allocation3 + $0x20] sm:$0xff]
    %v49 = vld [vmem:[#allocation3 + $0x28] sm:$0xff]
    %v50 = vld [vmem:[#allocation3 + $0x30] sm:$0xff]
    %v51 = vld [vmem:[#allocation6] sm:$0x7f]
    %v53 = vperm.slane %v51, 0
    %v54 = vperm.slane %v51, 1
    %v55 = vperm.slane %v51, 2
    %v56 = vperm.slane %v51, 3
    %v57 = vperm.slane %v51, 4
    %v58 = vperm.slane %v51, 5
    %v59 = vperm.slane %v51, 6
    %v67 = vmul.f32 %v44, %v53
    %v68 = vmul.f32 %v45, %v54
    %v69 = vmul.f32 %v46, %v55
    %v70 = vmul.f32 %v47, %v56
    %v71 = vmul.f32 %v48, %v57
    %v72 = vmul.f32 %v49, %v58
    %v73 = vmul.f32 %v50, %v59
    %v74 = vadd.f32 %v67, %v68
    %v75 = vadd.f32 %v74, %v69
    %v76 = vadd.f32 %v75, %v70
    %v77 = vadd.f32 %v76, %v71
    %v78 = vadd.f32 %v77, %v72
    %vm79 = vcmask 130048
    %v80 = vsel %vm79, %v73, 0.0
    %v81 = vadd.f32 %v78, %v80
    %82 = vadd.xlane.f32.xlu0 %v81
    %v83 = vpop.xlane.xlu0 %82
    %84 = vxpose.xlu0.b32.start [1/16] %v83, 128
    %85 = vxpose.xlu0.b32.cont [2/16] 0.0, 128
    %86 = vxpose.xlu0.b32.cont [3/16] 0.0, 128
    %87 = vxpose.xlu0.b32.cont [4/16] 0.0, 128
    %88 = vxpose.xlu0.b32.cont [5/16] 0.0, 128
    %89 = vxpose.xlu0.b32.cont [6/16] 0.0, 128
    %90 = vxpose.xlu0.b32.cont [7/16] 0.0, 128
    %91 = vxpose.xlu0.b32.cont [8/16] 0.0, 128
    %92 = vxpose.xlu0.b32.cont [9/16] 0.0, 128
    %93 = vxpose.xlu0.b32.cont [10/16] 0.0, 128
    %94 = vxpose.xlu0.b32.cont [11/16] 0.0, 128
    %95 = vxpose.xlu0.b32.cont [12/16] 0.0, 128
    %96 = vxpose.xlu0.b32.cont [13/16] 0.0, 128
    %97 = vxpose.xlu0.b32.cont [14/16] 0.0, 128
    %98 = vxpose.xlu0.b32.cont [15/16] 0.0, 128
    %99 = vxpose.xlu0.b32.end [16/16] 0.0, 128
    %v100 = vpop.trf.xlu0
    %v101 = vpop.trf.xlu0
    %v102 = vpop.trf.xlu0
    %v103 = vpop.trf.xlu0
    %v104 = vpop.trf.xlu0
    %v105 = vpop.trf.xlu0
    %v106 = vpop.trf.xlu0
    %v107 = vpop.trf.xlu0
    %v108 = vpop.trf.xlu0
    %v109 = vpop.trf.xlu0
    %v110 = vpop.trf.xlu0
    %v111 = vpop.trf.xlu0
    %v112 = vpop.trf.xlu0
    %v113 = vpop.trf.xlu0
    %v114 = vpop.trf.xlu0
    %v115 = vpop.trf.xlu0
    %s116 = sld [smem:[#allocation2]]
    %v117 = vstv %s116
    %v118 = vadd.f32 %v100, %v117
    %vm119 = vcmask 57344
    %120 = vst.msk [vmem:[#allocation8] sm:$0x1] %vm119, %v118
    // Predicated region
    $region22: #{tpu_custom_call.1} parent=1 // pred_check
      _
    $region23: #{tpu_custom_call.1} parent=1 // pred_check_branch
      %122 = sbr.rel (0) target = $region25
    $region24: #{tpu_custom_call.1} parent=1 // pred_region
      %124 = vsyncadd [#allocation5], 0
      %s126 = sshll.u32 [#allocation8], 4
      %s127 = int_to_ptr.vmem [resolvable:$true] %s126
      %s128 = sshll.u32 %s3, 4
      %s129 = int_to_ptr.hbm [resolvable:$true] %s128
      %131 = dma.vmem_to_hbm [thread:$0]  %s127, 16, %s129, [#allocation5]
    $region25: #{tpu_custom_call.1} parent=1 // pred_fallthru
      _
    // Predicated region
    $region26: #{tpu_custom_call.1} parent=1 // pred_check
      _
    $region27: #{tpu_custom_call.1} parent=1 // pred_check_branch
      %133 = sbr.rel (0) target = $region29
    $region28: #{tpu_custom_call.1} parent=1 // pred_region
      %135 = dma.done [#allocation5], 16
    $region29: #{tpu_custom_call.1} parent=1 // pred_fallthru
      _
    %136 = vsyncpa [#allocation4], 1
    %137 = vsyncpa [#allocation7], 1
    %138 = vsyncpa [#allocation5], 1

</llo_original>
